<compile_context>
chip_gen: v7x
topology: tpu7x:2x2x1
jax: 0.10.0
libtpu: 0.0.40
codegen_flags: <defaults>
</compile_context>

<pallas_src>
import numpy as np
import jax
import jax.numpy as jnp
from jax.experimental import pallas as pl
from jax.experimental.pallas import tpu as pltpu

EPS = 1e-5


def _pick_block_b(B, L, target_rows=256):
    """Smallest divisor of B whose folded row count (block_b*L) fills the MXU M
    dimension (>= 256 rows on v6e/v7x); falls back to the whole batch."""
    for d in range(1, B + 1):
        if B % d == 0 and d * L >= target_rows:
            return d
    return B


# ---------------------------------------------------------------------------
# Kernel 1: VariancePredictor (duration predictor)
# ---------------------------------------------------------------------------
def variance_predictor_kernel(x_ref, w1_ref, w2_ref, ps_ref, bl_ref, dur_ref):
    Bb, L, D = x_ref.shape
    F_ = ps_ref.shape[-1]
    M = Bb * L

    x2 = x_ref[...].astype(jnp.float32).reshape(M, D)      # fold batch block -> (M, D)

    # Row r of the folded operand belongs to batch element r // L.  These masks
    # implement Conv1d(padding=1) zero padding AND stop conv taps from leaking
    # across batch boundaries -- no HBM pad copy of x and no zeroed scratch.
    row = jax.lax.broadcasted_iota(jnp.int32, (M, 1), 0)
    has_prev = (row % L) != 0
    has_next = (row % L) != (L - 1)

    def conv3(h, wcat, bias_row, d_in):
        # 3-tap conv fused into a single matmul: concat the shifted operands along
        # the contraction axis -> (M, 3*d_in) @ (3*d_in, F)  (3x fewer MXU pushes).
        zrow = jnp.zeros((1, d_in), jnp.float32)
        h_prev = jnp.where(has_prev,
                           jnp.concatenate([zrow, h[:M - 1, :]], axis=0), 0.0)
        h_next = jnp.where(has_next,
                           jnp.concatenate([h[1:, :], zrow], axis=0), 0.0)
        hcat = jnp.concatenate([h_prev, h, h_next], axis=-1)
        return jnp.dot(hcat, wcat, preferred_element_type=jnp.float32) + bias_row

    def ln_relu(h, g_row, be_row):
        m = jnp.mean(h, axis=-1, keepdims=True)
        v = jnp.mean((h - m) ** 2, axis=-1, keepdims=True)
        h = (h - m) * jax.lax.rsqrt(v + EPS) * g_row + be_row
        return jnp.maximum(h, 0.0)

    ps = ps_ref[...]                                   # (7, F): b1,g1,be1,b2,g2,be2,wl
    h = ln_relu(conv3(x2, w1_ref[...], ps[0:1, :], D), ps[1:2, :], ps[2:3, :])
    h = ln_relu(conv3(h, w2_ref[...], ps[3:4, :], F_), ps[4:5, :], ps[5:6, :])

    # Linear(F -> 1) + ReLU as a VPU multiply + lane reduction (no N=1 MXU matmul).
    red = jnp.sum(h * ps[6:7, :], axis=-1, keepdims=True) + bl_ref[...]   # (M, 1)
    red = jnp.maximum(red, 0.0)
    # (M,1)->(Bb,L,1) is a layout-preserving split; this store is only 4*B*L bytes,
    # so its lane width is immaterial next to the (B, T, D) LR output.
    dur_ref[...] = red.reshape(Bb, L, 1).astype(dur_ref.dtype)


def variance_predictor(x, params, block_b=None):
    B, L, D = x.shape
    F_ = params["w1"].shape[-1]
    if block_b is None:
        block_b = _pick_block_b(B, L)

    # Pack weights once (tiny XLA ops): stacked conv weights so each fused conv is a
    # single matmul, and the six LN/bias rows + linear weight into one (7, F) array
    # (cuts 11 tiny BlockSpec inputs down to 5).
    w1cat = params["w1"].reshape(3 * D, F_)
    w2cat = params["w2"].reshape(3 * F_, F_)
    ps = jnp.concatenate([params["b1"], params["g1"], params["be1"],
                          params["b2"], params["g2"], params["be2"],
                          params["wl"].reshape(1, F_)], axis=0)           # (7, F)
    bl = params["bl"].reshape(1, 1)

    dur = pl.pallas_call(
        variance_predictor_kernel,
        out_shape=jax.ShapeDtypeStruct((B, L, 1), jnp.float32),
        grid_spec=pltpu.PrefetchScalarGridSpec(
            num_scalar_prefetch=0,
            grid=(B // block_b,),
            in_specs=[
                pl.BlockSpec((block_b, L, D), lambda b: (b, 0, 0)),
                pl.BlockSpec((3 * D, F_), lambda b: (0, 0)),
                pl.BlockSpec((3 * F_, F_), lambda b: (0, 0)),
                pl.BlockSpec((7, F_), lambda b: (0, 0)),
                pl.BlockSpec((1, 1), lambda b: (0, 0)),
            ],
            out_specs=pl.BlockSpec((block_b, L, 1), lambda b: (b, 0, 0)),
        ),
        compiler_params=pltpu.CompilerParams(dimension_semantics=("parallel",)),
    )(x, w1cat, w2cat, ps, bl)
    return dur[..., 0]                                  # (B, L)


# ---------------------------------------------------------------------------
# Kernel 2: LR() -- per (batch, T-tile): build a (tT, L) alignment slab and matmul
# ---------------------------------------------------------------------------
def length_regulator_kernel(se_ref, x_ref, out_ref):
    # se_ref: (1, 2, L) rows = (starts, ends); x_ref: (1, L, D); out_ref: (1, tT, D)
    tT = out_ref.shape[1]
    L = x_ref.shape[1]
    se = se_ref[0]                                      # (2, L)
    starts = se[0:1, :]
    ends = se[1:2, :]

    t0 = pl.program_id(1) * tT
    t = (t0 + jax.lax.broadcasted_iota(jnp.int32, (tT, L), 0)).astype(jnp.float32)
    # alignment[t, j] = 1  iff  starts[j] <= t < ends[j]
    align = jnp.where((t >= starts) & (t < ends), 1.0, 0.0)          # (tT, L)
    out_ref[0] = jnp.dot(align, x_ref[0],
                         preferred_element_type=jnp.float32).astype(out_ref.dtype)


def length_regulate(x, durations, mel_max_length=None, t_block=512):
    B, L, D = x.shape
    if mel_max_length is not None:
        T = int(mel_max_length)                         # training path: no device->host sync
    else:
        # inference path: output length is data dependent -> host sync unavoidable
        T = int(np.asarray(jnp.sum(durations, axis=-1)).max())

    dur_f = durations.astype(jnp.float32)
    ends = jnp.cumsum(dur_f, axis=-1)                   # O(L) cumsum, no LxL triangular matmul
    se = jnp.stack([ends - dur_f, ends], axis=1)        # (B, 2, L) = (starts, ends)

    tT = min(t_block, T)
    out = pl.pallas_call(
        length_regulator_kernel,
        out_shape=jax.ShapeDtypeStruct((B, T, D), x.dtype),
        grid_spec=pltpu.PrefetchScalarGridSpec(
            num_scalar_prefetch=0,
            grid=(B, pl.cdiv(T, tT)),
            in_specs=[
                pl.BlockSpec((1, 2, L), lambda b, ti: (b, 0, 0)),
                pl.BlockSpec((1, L, D), lambda b, ti: (b, 0, 0)),
            ],
            out_specs=pl.BlockSpec((1, tT, D), lambda b, ti: (b, ti, 0)),
        ),
        compiler_params=pltpu.CompilerParams(
            dimension_semantics=("parallel", "parallel")),
    )(se, x)
    return out


# ---------------------------------------------------------------------------
# LengthRegulator.forward
# ---------------------------------------------------------------------------
def length_regulator_forward(x, params, alpha=1.0, target=None, mel_max_length=None):
    duration_predictor_output = variance_predictor(x, params)       # (B, L) f32
    if target is not None:
        output = length_regulate(x, target, mel_max_length)
        return output, duration_predictor_output
    # inference branch: (dpo*alpha + 0.5).int() == floor for nonnegative values (matches torch)
    dur_int = (duration_predictor_output * alpha + 0.5).astype(jnp.int32)
    output = length_regulate(x, dur_int, None)
    mel_pos = jnp.arange(1, output.shape[1] + 1, dtype=jnp.int32)[None, :]
    return output, mel_pos


# ---------------------------------------------------------------------------
# Pure-JAX reference (for verification)
# ---------------------------------------------------------------------------
def _ref_forward(x, params, target, mel_max_length):
    B, L, D = x.shape

    def conv3(h, w, b):
        hp = jnp.pad(h, ((0, 0), (1, 1), (0, 0)))
        return (hp[:, 0:L] @ w[0] + hp[:, 1:L + 1] @ w[1] + hp[:, 2:L + 2] @ w[2]) + b

    def ln(h, g, be):
        m = h.mean(-1, keepdims=True)
        v = ((h - m) ** 2).mean(-1, keepdims=True)
        return (h - m) / jnp.sqrt(v + EPS) * g + be

    h = jnp.maximum(ln(conv3(x, params["w1"], params["b1"]), params["g1"], params["be1"]), 0.0)
    h = jnp.maximum(ln(conv3(h, params["w2"], params["b2"]), params["g2"], params["be2"]), 0.0)
    dpo = jnp.maximum(h @ params["wl"] + params["bl"], 0.0)[..., 0]

    T = mel_max_length
    ends = jnp.cumsum(target.astype(jnp.float32), axis=-1)
    starts = ends - target.astype(jnp.float32)
    t = jnp.arange(T, dtype=jnp.float32)[None, :, None]
    align = ((t >= starts[:, None, :]) & (t < ends[:, None, :])).astype(jnp.float32)
    out = jnp.einsum("btl,bld->btd", align, x)
    return out, dpo


if __name__ == "__main__":
    B, L, D, F_ = 2, 8, 32, 32
    mel_max_length = 40

    key = jax.random.PRNGKey(0)
    ks = jax.random.split(key, 8)
    x = jax.random.normal(ks[0], (B, L, D), dtype=jnp.float32)
    target = jax.random.randint(ks[1], (B, L), 1, 5, dtype=jnp.int32)   # durations 1..4

    params = {
        "w1": 0.1 * jax.random.normal(ks[2], (3, D, F_), dtype=jnp.float32),
        "b1": jnp.zeros((1, F_), jnp.float32),
        "g1": jnp.ones((1, F_), jnp.float32),
        "be1": jnp.zeros((1, F_), jnp.float32),
        "w2": 0.1 * jax.random.normal(ks[3], (3, F_, F_), dtype=jnp.float32),
        "b2": jnp.zeros((1, F_), jnp.float32),
        "g2": jnp.ones((1, F_), jnp.float32),
        "be2": jnp.zeros((1, F_), jnp.float32),
        "wl": 0.1 * jax.random.normal(ks[4], (F_, 1), dtype=jnp.float32),
        "bl": 0.01 * jnp.ones((1, 1), jnp.float32),
    }

    output, dpo = length_regulator_forward(x, params, target=target,
                                           mel_max_length=mel_max_length)
    jax.block_until_ready(output)
    jax.block_until_ready(dpo)

    ref_out, ref_dpo = _ref_forward(x, params, target, mel_max_length)
    assert output.shape == (B, mel_max_length, D)
    assert dpo.shape == (B, L)
    np.testing.assert_allclose(np.asarray(output), np.asarray(ref_out), atol=1e-4, rtol=1e-4)
    np.testing.assert_allclose(np.asarray(dpo), np.asarray(ref_dpo), atol=1e-4, rtol=1e-4)

    print("KERNEL_OK")
</pallas_src>

<mosaic_0001>
module attributes {stable_mosaic.version = 11 : i64} {
  func.func @variance_predictor_kernel(%arg0: i32, %arg1: memref<2x8x32xf32, #tpu.memory_space<vmem>>, %arg2: memref<96x32xf32, #tpu.memory_space<vmem>>, %arg3: memref<96x32xf32, #tpu.memory_space<vmem>>, %arg4: memref<7x32xf32, #tpu.memory_space<vmem>>, %arg5: memref<1x1xf32, #tpu.memory_space<vmem>>, %arg6: memref<2x8x1xf32, #tpu.memory_space<vmem>>) attributes {dimension_semantics = [#tpu.dimension_semantics<parallel>], iteration_bounds = array<i64: 1>, scalar_prefetch = 0 : i64, scratch_operands = 0 : i64, tpu.core_type = #tpu.core_type<tc>, window_params = [{transform_indices = @transform_0, window_bounds = array<i64: 2, 8, 32>}, {pipeline_mode = #tpu.pipeline_mode<synchronous>, transform_indices = @transform_1, window_bounds = array<i64: 96, 32>}, {pipeline_mode = #tpu.pipeline_mode<synchronous>, transform_indices = @transform_2, window_bounds = array<i64: 96, 32>}, {pipeline_mode = #tpu.pipeline_mode<synchronous>, transform_indices = @transform_3, window_bounds = array<i64: 7, 32>}, {pipeline_mode = #tpu.pipeline_mode<synchronous>, transform_indices = @transform_4, window_bounds = array<i64: 1, 1>}, {transform_indices = @transform_5, window_bounds = array<i64: 2, 8, 1>}]} {
    %c0 = arith.constant 0 : index
    %c0_0 = arith.constant 0 : index
    %c0_1 = arith.constant 0 : index
    %0 = vector.load %arg1[%c0, %c0_0, %c0_1] : memref<2x8x32xf32, #tpu.memory_space<vmem>>, vector<2x8x32xf32>
    %1 = vector.shape_cast %0 : vector<2x8x32xf32> to vector<16x32xf32>
    %2 = tpu.iota {dimensions = array<i32: 0>} : vector<16x1xi32>
    %c8_i32 = arith.constant 8 : i32
    %c0_i32 = arith.constant 0 : i32
    %3 = arith.cmpi eq, %c8_i32, %c0_i32 : i32
    %c1_i32 = arith.constant 1 : i32
    %4 = arith.select %3, %c1_i32, %c8_i32 : i32
    %5 = vector.broadcast %4 : i32 to vector<16x1xi32>
    %6 = arith.remsi %2, %5 : vector<16x1xi32>
    %c0_i32_2 = arith.constant 0 : i32
    %7 = vector.broadcast %c0_i32_2 : i32 to vector<16x1xi32>
    %8 = arith.cmpi ne, %6, %7 : vector<16x1xi32>
    %c0_i32_3 = arith.constant 0 : i32
    %9 = vector.broadcast %c0_i32_3 : i32 to vector<16x1xi32>
    %10 = arith.cmpi slt, %6, %9 : vector<16x1xi32>
    %c0_i32_4 = arith.constant 0 : i32
    %11 = arith.cmpi slt, %4, %c0_i32_4 : i32
    %12 = vector.broadcast %11 : i1 to vector<16x1xi1>
    %13 = vector.broadcast %12 : vector<16x1xi1> to vector<16x1xi1>
    %14 = arith.xori %10, %13 : vector<16x1xi1>
    %15 = arith.andi %14, %8 : vector<16x1xi1>
    %16 = vector.broadcast %4 : i32 to vector<16x1xi32>
    %17 = arith.addi %6, %16 : vector<16x1xi32>
    %18 = arith.select %15, %17, %6 : vector<16x1xi1>, vector<16x1xi32>
    %c0_i32_5 = arith.constant 0 : i32
    %19 = vector.broadcast %c0_i32_5 : i32 to vector<16x1xi32>
    %20 = arith.cmpi ne, %18, %19 : vector<16x1xi32>
    %c8_i32_6 = arith.constant 8 : i32
    %c0_i32_7 = arith.constant 0 : i32
    %21 = arith.cmpi eq, %c8_i32_6, %c0_i32_7 : i32
    %c1_i32_8 = arith.constant 1 : i32
    %22 = arith.select %21, %c1_i32_8, %c8_i32_6 : i32
    %23 = vector.broadcast %22 : i32 to vector<16x1xi32>
    %24 = arith.remsi %2, %23 : vector<16x1xi32>
    %c0_i32_9 = arith.constant 0 : i32
    %25 = vector.broadcast %c0_i32_9 : i32 to vector<16x1xi32>
    %26 = arith.cmpi ne, %24, %25 : vector<16x1xi32>
    %c0_i32_10 = arith.constant 0 : i32
    %27 = vector.broadcast %c0_i32_10 : i32 to vector<16x1xi32>
    %28 = arith.cmpi slt, %24, %27 : vector<16x1xi32>
    %c0_i32_11 = arith.constant 0 : i32
    %29 = arith.cmpi slt, %22, %c0_i32_11 : i32
    %30 = vector.broadcast %29 : i1 to vector<16x1xi1>
    %31 = vector.broadcast %30 : vector<16x1xi1> to vector<16x1xi1>
    %32 = arith.xori %28, %31 : vector<16x1xi1>
    %33 = arith.andi %32, %26 : vector<16x1xi1>
    %34 = vector.broadcast %22 : i32 to vector<16x1xi32>
    %35 = arith.addi %24, %34 : vector<16x1xi32>
    %36 = arith.select %33, %35, %24 : vector<16x1xi1>, vector<16x1xi32>
    %c7_i32 = arith.constant 7 : i32
    %37 = vector.broadcast %c7_i32 : i32 to vector<16x1xi32>
    %38 = arith.cmpi ne, %36, %37 : vector<16x1xi32>
    %c0_12 = arith.constant 0 : index
    %c0_13 = arith.constant 0 : index
    %39 = vector.load %arg4[%c0_12, %c0_13] : memref<7x32xf32, #tpu.memory_space<vmem>>, vector<7x32xf32>
    %c0_14 = arith.constant 0 : index
    %c0_15 = arith.constant 0 : index
    %40 = vector.load %arg2[%c0_14, %c0_15] : memref<96x32xf32, #tpu.memory_space<vmem>>, vector<96x32xf32>
    %41 = vector.extract_strided_slice %39 {offsets = [0, 0], sizes = [1, 32], strides = [1, 1]} : vector<7x32xf32> to vector<1x32xf32>
    %cst = arith.constant 0.000000e+00 : f32
    %42 = vector.broadcast %cst : f32 to vector<1x32xf32>
    %43 = vector.extract_strided_slice %1 {offsets = [0, 0], sizes = [15, 32], strides = [1, 1]} : vector<16x32xf32> to vector<15x32xf32>
    %44 = tpu.concatenate %42, %43 in 0 : vector<1x32xf32>, vector<15x32xf32> -> vector<16x32xf32>
    %cst_16 = arith.constant 0.000000e+00 : f32
    %45 = vector.shape_cast %20 : vector<16x1xi1> to vector<16x1xi1>
    %46 = vector.broadcast %45 : vector<16x1xi1> to vector<16x32xi1>
    %47 = vector.broadcast %cst_16 : f32 to vector<16x32xf32>
    %48 = arith.select %46, %44, %47 : vector<16x32xi1>, vector<16x32xf32>
    %49 = vector.extract_strided_slice %1 {offsets = [1, 0], sizes = [15, 32], strides = [1, 1]} : vector<16x32xf32> to vector<15x32xf32>
    %50 = tpu.concatenate %49, %42 in 0 : vector<15x32xf32>, vector<1x32xf32> -> vector<16x32xf32>
    %cst_17 = arith.constant 0.000000e+00 : f32
    %51 = vector.shape_cast %38 : vector<16x1xi1> to vector<16x1xi1>
    %52 = vector.broadcast %51 : vector<16x1xi1> to vector<16x32xi1>
    %53 = vector.broadcast %cst_17 : f32 to vector<16x32xf32>
    %54 = arith.select %52, %50, %53 : vector<16x32xi1>, vector<16x32xf32>
    %55 = tpu.concatenate %48, %1, %54 in 1 : vector<16x32xf32>, vector<16x32xf32>, vector<16x32xf32> -> vector<16x96xf32>
    %cst_18 = arith.constant dense<0.000000e+00> : vector<16x32xf32>
    %56 = tpu.matmul %55, %40, %cst_18 {dimension_numbers = #tpu.dot_dimension_numbers<[1], [0], [0], [1], [0, 0, 1, 1], [], []>} : vector<16x96xf32>, vector<96x32xf32>, vector<16x32xf32> -> vector<16x32xf32>
    %57 = vector.broadcast %41 : vector<1x32xf32> to vector<16x32xf32>
    %58 = arith.addf %56, %57 : vector<16x32xf32>
    %59 = vector.extract_strided_slice %39 {offsets = [1, 0], sizes = [1, 32], strides = [1, 1]} : vector<7x32xf32> to vector<1x32xf32>
    %60 = vector.extract_strided_slice %39 {offsets = [2, 0], sizes = [1, 32], strides = [1, 1]} : vector<7x32xf32> to vector<1x32xf32>
    %cst_19 = arith.constant dense<0.000000e+00> : vector<16xf32>
    %61 = vector.multi_reduction <add>, %58, %cst_19 [1] : vector<16x32xf32> to vector<16xf32>
    %62 = vector.shape_cast %61 : vector<16xf32> to vector<16x1xf32>
    %cst_20 = arith.constant 3.200000e+01 : f32
    %63 = vector.broadcast %cst_20 : f32 to vector<16x1xf32>
    %64 = arith.divf %62, %63 : vector<16x1xf32>
    %65 = vector.broadcast %64 : vector<16x1xf32> to vector<16x32xf32>
    %66 = arith.subf %58, %65 : vector<16x32xf32>
    %67 = arith.mulf %66, %66 : vector<16x32xf32>
    %cst_21 = arith.constant dense<0.000000e+00> : vector<16xf32>
    %68 = vector.multi_reduction <add>, %67, %cst_21 [1] : vector<16x32xf32> to vector<16xf32>
    %69 = vector.shape_cast %68 : vector<16xf32> to vector<16x1xf32>
    %cst_22 = arith.constant 3.200000e+01 : f32
    %70 = vector.broadcast %cst_22 : f32 to vector<16x1xf32>
    %71 = arith.divf %69, %70 : vector<16x1xf32>
    %72 = vector.broadcast %64 : vector<16x1xf32> to vector<16x32xf32>
    %73 = arith.subf %58, %72 : vector<16x32xf32>
    %cst_23 = arith.constant 9.99999974E-6 : f32
    %74 = vector.broadcast %cst_23 : f32 to vector<16x1xf32>
    %75 = arith.addf %71, %74 : vector<16x1xf32>
    %76 = math.rsqrt %75 : vector<16x1xf32>
    %77 = vector.broadcast %76 : vector<16x1xf32> to vector<16x32xf32>
    %78 = arith.mulf %73, %77 : vector<16x32xf32>
    %79 = vector.broadcast %59 : vector<1x32xf32> to vector<16x32xf32>
    %80 = arith.mulf %78, %79 : vector<16x32xf32>
    %81 = vector.broadcast %60 : vector<1x32xf32> to vector<16x32xf32>
    %82 = arith.addf %80, %81 : vector<16x32xf32>
    %cst_24 = arith.constant 0.000000e+00 : f32
    %83 = vector.broadcast %cst_24 : f32 to vector<16x32xf32>
    %84 = arith.maximumf %82, %83 : vector<16x32xf32>
    %c0_25 = arith.constant 0 : index
    %c0_26 = arith.constant 0 : index
    %85 = vector.load %arg3[%c0_25, %c0_26] : memref<96x32xf32, #tpu.memory_space<vmem>>, vector<96x32xf32>
    %86 = vector.extract_strided_slice %39 {offsets = [3, 0], sizes = [1, 32], strides = [1, 1]} : vector<7x32xf32> to vector<1x32xf32>
    %cst_27 = arith.constant 0.000000e+00 : f32
    %87 = vector.broadcast %cst_27 : f32 to vector<1x32xf32>
    %88 = vector.extract_strided_slice %84 {offsets = [0, 0], sizes = [15, 32], strides = [1, 1]} : vector<16x32xf32> to vector<15x32xf32>
    %89 = tpu.concatenate %87, %88 in 0 : vector<1x32xf32>, vector<15x32xf32> -> vector<16x32xf32>
    %cst_28 = arith.constant 0.000000e+00 : f32
    %90 = vector.shape_cast %20 : vector<16x1xi1> to vector<16x1xi1>
    %91 = vector.broadcast %90 : vector<16x1xi1> to vector<16x32xi1>
    %92 = vector.broadcast %cst_28 : f32 to vector<16x32xf32>
    %93 = arith.select %91, %89, %92 : vector<16x32xi1>, vector<16x32xf32>
    %94 = vector.extract_strided_slice %84 {offsets = [1, 0], sizes = [15, 32], strides = [1, 1]} : vector<16x32xf32> to vector<15x32xf32>
    %95 = tpu.concatenate %94, %87 in 0 : vector<15x32xf32>, vector<1x32xf32> -> vector<16x32xf32>
    %cst_29 = arith.constant 0.000000e+00 : f32
    %96 = vector.shape_cast %38 : vector<16x1xi1> to vector<16x1xi1>
    %97 = vector.broadcast %96 : vector<16x1xi1> to vector<16x32xi1>
    %98 = vector.broadcast %cst_29 : f32 to vector<16x32xf32>
    %99 = arith.select %97, %95, %98 : vector<16x32xi1>, vector<16x32xf32>
    %100 = tpu.concatenate %93, %84, %99 in 1 : vector<16x32xf32>, vector<16x32xf32>, vector<16x32xf32> -> vector<16x96xf32>
    %cst_30 = arith.constant dense<0.000000e+00> : vector<16x32xf32>
    %101 = tpu.matmul %100, %85, %cst_30 {dimension_numbers = #tpu.dot_dimension_numbers<[1], [0], [0], [1], [0, 0, 1, 1], [], []>} : vector<16x96xf32>, vector<96x32xf32>, vector<16x32xf32> -> vector<16x32xf32>
    %102 = vector.broadcast %86 : vector<1x32xf32> to vector<16x32xf32>
    %103 = arith.addf %101, %102 : vector<16x32xf32>
    %104 = vector.extract_strided_slice %39 {offsets = [4, 0], sizes = [1, 32], strides = [1, 1]} : vector<7x32xf32> to vector<1x32xf32>
    %105 = vector.extract_strided_slice %39 {offsets = [5, 0], sizes = [1, 32], strides = [1, 1]} : vector<7x32xf32> to vector<1x32xf32>
    %cst_31 = arith.constant dense<0.000000e+00> : vector<16xf32>
    %106 = vector.multi_reduction <add>, %103, %cst_31 [1] : vector<16x32xf32> to vector<16xf32>
    %107 = vector.shape_cast %106 : vector<16xf32> to vector<16x1xf32>
    %cst_32 = arith.constant 3.200000e+01 : f32
    %108 = vector.broadcast %cst_32 : f32 to vector<16x1xf32>
    %109 = arith.divf %107, %108 : vector<16x1xf32>
    %110 = vector.broadcast %109 : vector<16x1xf32> to vector<16x32xf32>
    %111 = arith.subf %103, %110 : vector<16x32xf32>
    %112 = arith.mulf %111, %111 : vector<16x32xf32>
    %cst_33 = arith.constant dense<0.000000e+00> : vector<16xf32>
    %113 = vector.multi_reduction <add>, %112, %cst_33 [1] : vector<16x32xf32> to vector<16xf32>
    %114 = vector.shape_cast %113 : vector<16xf32> to vector<16x1xf32>
    %cst_34 = arith.constant 3.200000e+01 : f32
    %115 = vector.broadcast %cst_34 : f32 to vector<16x1xf32>
    %116 = arith.divf %114, %115 : vector<16x1xf32>
    %117 = vector.broadcast %109 : vector<16x1xf32> to vector<16x32xf32>
    %118 = arith.subf %103, %117 : vector<16x32xf32>
    %cst_35 = arith.constant 9.99999974E-6 : f32
    %119 = vector.broadcast %cst_35 : f32 to vector<16x1xf32>
    %120 = arith.addf %116, %119 : vector<16x1xf32>
    %121 = math.rsqrt %120 : vector<16x1xf32>
    %122 = vector.broadcast %121 : vector<16x1xf32> to vector<16x32xf32>
    %123 = arith.mulf %118, %122 : vector<16x32xf32>
    %124 = vector.broadcast %104 : vector<1x32xf32> to vector<16x32xf32>
    %125 = arith.mulf %123, %124 : vector<16x32xf32>
    %126 = vector.broadcast %105 : vector<1x32xf32> to vector<16x32xf32>
    %127 = arith.addf %125, %126 : vector<16x32xf32>
    %cst_36 = arith.constant 0.000000e+00 : f32
    %128 = vector.broadcast %cst_36 : f32 to vector<16x32xf32>
    %129 = arith.maximumf %127, %128 : vector<16x32xf32>
    %130 = vector.extract_strided_slice %39 {offsets = [6, 0], sizes = [1, 32], strides = [1, 1]} : vector<7x32xf32> to vector<1x32xf32>
    %131 = vector.broadcast %130 : vector<1x32xf32> to vector<16x32xf32>
    %132 = arith.mulf %129, %131 : vector<16x32xf32>
    %cst_37 = arith.constant dense<0.000000e+00> : vector<16xf32>
    %133 = vector.multi_reduction <add>, %132, %cst_37 [1] : vector<16x32xf32> to vector<16xf32>
    %134 = vector.shape_cast %133 : vector<16xf32> to vector<16x1xf32>
    %c0_38 = arith.constant 0 : index
    %c0_39 = arith.constant 0 : index
    %135 = vector.load %arg5[%c0_38, %c0_39] : memref<1x1xf32, #tpu.memory_space<vmem>>, vector<1x1xf32>
    %136 = vector.broadcast %135 : vector<1x1xf32> to vector<16x1xf32>
    %137 = arith.addf %134, %136 : vector<16x1xf32>
    %cst_40 = arith.constant 0.000000e+00 : f32
    %138 = vector.broadcast %cst_40 : f32 to vector<16x1xf32>
    %139 = arith.maximumf %137, %138 : vector<16x1xf32>
    %140 = vector.shape_cast %139 : vector<16x1xf32> to vector<2x8x1xf32>
    %c0_41 = arith.constant 0 : index
    %c0_42 = arith.constant 0 : index
    %c0_43 = arith.constant 0 : index
    %141 = vector.load %arg6[%c0_41, %c0_42, %c0_43] : memref<2x8x1xf32, #tpu.memory_space<vmem>>, vector<2x8x1xf32>
    tpu.vector_store %arg6[%c0_41, %c0_42, %c0_43], %140 {strides = array<i32>} : memref<2x8x1xf32, #tpu.memory_space<vmem>>, vector<2x8x1xf32>,
    return
  }
  func.func @transform_0(%arg0: i32) -> (i32, i32, i32) {
    %c0_i32 = arith.constant 0 : i32
    %c0_i32_0 = arith.constant 0 : i32
    %c0_i32_1 = arith.constant 0 : i32
    return %arg0, %c0_i32, %c0_i32_0 : i32, i32, i32
  }
  func.func @transform_1(%arg0: i32) -> (i32, i32) {
    %c0_i32 = arith.constant 0 : i32
    %c0_i32_0 = arith.constant 0 : i32
    %c0_i32_1 = arith.constant 0 : i32
    return %c0_i32, %c0_i32_0 : i32, i32
  }
  func.func @transform_2(%arg0: i32) -> (i32, i32) {
    %c0_i32 = arith.constant 0 : i32
    %c0_i32_0 = arith.constant 0 : i32
    %c0_i32_1 = arith.constant 0 : i32
    return %c0_i32, %c0_i32_0 : i32, i32
  }
  func.func @transform_3(%arg0: i32) -> (i32, i32) {
    %c0_i32 = arith.constant 0 : i32
    %c0_i32_0 = arith.constant 0 : i32
    %c0_i32_1 = arith.constant 0 : i32
    return %c0_i32, %c0_i32_0 : i32, i32
  }
  func.func @transform_4(%arg0: i32) -> (i32, i32) {
    %c0_i32 = arith.constant 0 : i32
    %c0_i32_0 = arith.constant 0 : i32
    %c0_i32_1 = arith.constant 0 : i32
    return %c0_i32, %c0_i32_0 : i32, i32
  }
  func.func @transform_5(%arg0: i32) -> (i32, i32, i32) {
    %c0_i32 = arith.constant 0 : i32
    %c0_i32_0 = arith.constant 0 : i32
    %c0_i32_1 = arith.constant 0 : i32
    return %arg0, %c0_i32, %c0_i32_0 : i32, i32, i32
  }
}

</mosaic_0001>

<llo_original>
// kernel: tpu_custom_call.1
$region0: #{tpu_custom_call.1}
  #allocation0 [shape = 'u32[]', space=smem, size = 0x4, offset = 0x4, fixed_abs, tag = 'smem constant byte address 0x4 - core index']
  #allocation1 [shape = 'u32[144,128]{1,0:T(1,128)}', space=vmem, size = 0x12000, scoped, tag = 'internal scratch']
  #allocation2 [shape = 'f32[1,1]{1,0:T(1,128)S(1)}', space=vmem, size = 0x200, scoped, tag = 'scoped memory for tpu_custom_call.1']
  %s0 = inlined_call_operand.vmem [shape: f32[2,8,32], index: 0, kind: input, shape index: {}]
  %s1 = inlined_call_operand.vmem [shape: f32[96,32], index: 1, kind: input, shape index: {}]
  %s2 = inlined_call_operand.vmem [shape: f32[96,32], index: 2, kind: input, shape index: {}]
  %s3 = inlined_call_operand.vmem [shape: f32[7,32], index: 3, kind: input, shape index: {}]
  %s4 = inlined_call_operand.<no memory space> [shape: f32[1,1], index: 4, kind: input, shape index: {}]
  %s5 = inlined_call_operand.vmem [shape: f32[2,8,1], index: 5, kind: output, shape index: {}]
  %s6 = sld [smem:[#allocation0]]
  $region30: #{tpu_custom_call.1} parent=0
    _
  %s8 = ssub.s32 1, %s6
  %s9 = scalar_select 0, %s8, %s6
  %v10 = vstv %s4
  %11 = vst [vmem:[#allocation2] sm:$0x1] %v10
  // Predicated region
  $region2: #{tpu_custom_call.1} parent=0 // pred_check
    _
  $region3: #{tpu_custom_call.1} parent=0 // pred_check_branch
    %13 = sbr.rel (0) target = $region5
  $region4: #{tpu_custom_call.1} parent=0 // pred_region
    _
  $region5: #{tpu_custom_call.1} parent=0 // pred_fallthru
    _
  // Predicated region
  $region6: #{tpu_custom_call.1} parent=0 // pred_check
    _
  $region7: #{tpu_custom_call.1} parent=0 // pred_check_branch
    %15 = sbr.rel (0) target = $region9
  $region8: #{tpu_custom_call.1} parent=0 // pred_region
    _
  $region9: #{tpu_custom_call.1} parent=0 // pred_fallthru
    _
  // Predicated region
  $region10: #{tpu_custom_call.1} parent=0 // pred_check
    _
  $region11: #{tpu_custom_call.1} parent=0 // pred_check_branch
    %17 = sbr.rel (0) target = $region13
  $region12: #{tpu_custom_call.1} parent=0 // pred_region
    _
  $region13: #{tpu_custom_call.1} parent=0 // pred_fallthru
    _
  // Predicated region
  $region14: #{tpu_custom_call.1} parent=0 // pred_check
    _
  $region15: #{tpu_custom_call.1} parent=0 // pred_check_branch
    %19 = sbr.rel (0) target = $region17
  $region16: #{tpu_custom_call.1} parent=0 // pred_region
    _
  $region17: #{tpu_custom_call.1} parent=0 // pred_fallthru
    _
  // Predicated region
  $region18: #{tpu_custom_call.1} parent=0 // pred_check
    _
  $region19: #{tpu_custom_call.1} parent=0 // pred_check_branch
    %21 = sbr.rel (0) target = $region21
  $region20: #{tpu_custom_call.1} parent=0 // pred_region
    _
  $region21: #{tpu_custom_call.1} parent=0 // pred_fallthru
    _
  %v22 = vld [vmem:[%s0] sm:$0xff]
  %v23 = vld [vmem:[%s0 + $0x8] sm:$0xff]
  %v24 = vlaneseq
  %v25 = vshrl.u32 %v24, 7
  %v26 = vadd.s32 %v25, 8
  %vm27 = vcmp.lt.s32.totalorder %v25, 0
  %v28 = vsub.s32 0, %v25
  %v29 = vsel %vm27, %v28, %v25
  %v30 = vshrl.u32 %v29, 3
  %v31 = vand.u32 %v29, 7
  %v32 = vsub.s32 0, %v31
  %v33 = vsel %vm27, %v32, %v31
  %vm34 = vcmp.lt.s32.totalorder %v26, 0
  %v35 = vsub.s32 0, %v26
  %v36 = vsel %vm34, %v35, %v26
  %v37 = vshrl.u32 %v36, 3
  %v38 = vand.u32 %v36, 7
  %v39 = vsub.s32 0, %v38
  %v40 = vsel %vm34, %v39, %v38
  %vm41 = vcmp.ne.s32.totalorder %v33, 0
  %vm42 = vcmp.ne.s32.totalorder %v40, 0
  %vm43 = vcmp.lt.s32.totalorder %v33, 0
  %vm44 = vcmp.lt.s32.totalorder %v40, 0
  %vm45 = vmand %vm43, %vm41
  %vm46 = vmand %vm44, %vm42
  %v47 = vadd.s32 %v33, 8
  %v48 = vadd.s32 %v40, 8
  %v49 = vsel %vm45, %v47, %v33
  %v50 = vsel %vm46, %v48, %v40
  %vm51 = vcmp.ne.s32.totalorder %v49, 0
  %vm52 = vcmp.ne.s32.totalorder %v50, 0
  %vm53 = vcmp.ne.s32.totalorder %v49, 7
  %vm54 = vcmp.ne.s32.totalorder %v50, 7
  %v55 = vld [vmem:[%s3] sm:$0x7f]
  %v56 = vld [vmem:[%s1] sm:$0xff]
  %v57 = vld [vmem:[%s1 + $0x8] sm:$0xff]
  %v58 = vld [vmem:[%s1 + $0x10] sm:$0xff]
  %v59 = vld [vmem:[%s1 + $0x18] sm:$0xff]
  %v60 = vld [vmem:[%s1 + $0x20] sm:$0xff]
  %v61 = vld [vmem:[%s1 + $0x28] sm:$0xff]
  %v62 = vld [vmem:[%s1 + $0x30] sm:$0xff]
  %v63 = vld [vmem:[%s1 + $0x38] sm:$0xff]
  %v64 = vld [vmem:[%s1 + $0x40] sm:$0xff]
  %v65 = vld [vmem:[%s1 + $0x48] sm:$0xff]
  %v66 = vld [vmem:[%s1 + $0x50] sm:$0xff]
  %v67 = vld [vmem:[%s1 + $0x58] sm:$0xff]
  %vm70 = vcmask 1040384
  %v71 = vrot.slane %v22, 7
  %v72 = vrot.slane %v23, 7
  %v73 = vsel %vm70, %v71, %v72
  %v76 = vsel %vm70, 0.0, %v71
  %v77 = vsel %vm51, 1, 0
  %v78 = vsel %vm52, 1, 0
  %vm79 = vcmp.eq.s32.totalorder %v77, 1
  %vm80 = vcmp.eq.s32.totalorder %v78, 1
  %v81 = vsel %vm79, %v76, 0.0
  %v82 = vsel %vm80, %v73, 0.0
  %vm83 = vcmask 1046528
  %v84 = vrot.slane %v22, 1
  %v85 = vrot.slane %v23, 1
  %v86 = vsel %vm83, %v84, %v85
  %v89 = vsel %vm83, %v85, 0.0
  %v90 = vsel %vm53, 1, 0
  %v91 = vsel %vm54, 1, 0
  %vm92 = vcmp.eq.s32.totalorder %v90, 1
  %vm93 = vcmp.eq.s32.totalorder %v91, 1
  %v94 = vsel %vm92, %v86, 0.0
  %v95 = vsel %vm93, %v89, 0.0
  %96 = vrot.lane.b32.xlu0 %v22, 32
  %v97 = vpop.permute.xlu0 %96
  %98 = vrot.lane.b32.xlu0 %v23, 32
  %v99 = vpop.permute.xlu0 %98
  %104 = vrot.lane.b32.xlu0 %v94, 64
  %v105 = vpop.permute.xlu0 %104
  %106 = vrot.lane.b32.xlu0 %v95, 64
  %v107 = vpop.permute.xlu0 %106
  %vm110 = vcmask 261120
  %v111 = vsel %vm110, %v81, %v97
  %v112 = vsel %vm110, %v82, %v99
  %vm113 = vcmask 523264
  %v114 = vsel %vm113, %v111, %v105
  %v115 = vsel %vm113, %v112, %v107
  %v116 = vlaneseq
  %v117 = vshrl.u32 %v116, 7
  %v118 = vsub.s32 0, %v117
  %v119 = vrot.slane %v55, %v118
  %vm120 = vcmask 785408
  %v122 = vsel %vm120, %v114, 0
  %v125 = vsel %vm120, %v115, 0
  %127 = vmatprep.subr.mxu0 0.0
  %128 = vmatpush1.msra.mxu0 %v56
  %129 = vmatprep.subr.mxu0 0.0
  %130 = vmatpush1.msra.mxu0 %v57
  %131 = vmatprep.subr.mxu0 0.0
  %132 = vmatpush1.msra.mxu0 %v58
  %133 = vmatprep.subr.mxu0 0.0
  %134 = vmatpush1.msra.mxu0 %v59
  %135 = vmatprep.subr.mxu0 0.0
  %136 = vmatpush1.msra.mxu0 %v60
  %137 = vmatprep.subr.mxu0 0.0
  %138 = vmatpush1.msra.mxu0 %v61
  %139 = vmatprep.subr.mxu0 0.0
  %140 = vmatpush1.msra.mxu0 %v62
  %141 = vmatprep.subr.mxu0 0.0
  %142 = vmatpush1.msra.mxu0 %v63
  %143 = vmatprep.subr.mxu0 0.0
  %144 = vmatpush1.msra.mxu0 %v64
  %145 = vmatprep.subr.mxu0 0.0
  %146 = vmatpush1.msra.mxu0 %v65
  %147 = vmatprep.subr.mxu0 0.0
  %148 = vmatpush1.msra.mxu0 %v66
  %149 = vmatprep.subr.mxu0 0.0
  %150 = vmatpush1.msra.mxu0 %v67
  %151 = vmatprep.subr.mxu0 0.0
  %152 = vmatpush1.msra.mxu0 0.0
  %153 = vmatprep.subr.mxu0 0.0
  %154 = vmatpush1.msra.mxu0 0.0
  %155 = vmatprep.subr.mxu0 0.0
  %156 = vmatpush1.msra.mxu0 0.0
  %157 = vmatprep.subr.mxu0 0.0
  %158 = vmatpush1.msra.mxu0 0.0
  %159 = vmatprep.subr.mxu0 0.0
  %160 = vmatpush1.msra.mxu0 0.0
  %161 = vmatprep.subr.mxu0 0.0
  %162 = vmatpush1.msra.mxu0 0.0
  %163 = vmatprep.subr.mxu0 0.0
  %164 = vmatpush1.msra.mxu0 0.0
  %165 = vmatprep.subr.mxu0 0.0
  %166 = vmatpush1.msra.mxu0 0.0
  %167 = vmatprep.subr.mxu0 0.0
  %168 = vmatpush1.msra.mxu0 0.0
  %169 = vmatprep.subr.mxu0 0.0
  %170 = vmatpush1.msra.mxu0 0.0
  %171 = vmatprep.subr.mxu0 0.0
  %172 = vmatpush1.msra.mxu0 0.0
  %173 = vmatprep.subr.mxu0 0.0
  %174 = vmatpush1.msra.mxu0 0.0
  %175 = vmatprep.subr.mxu0 0.0
  %176 = vmatpush1.msra.mxu0 0.0
  %177 = vmatprep.subr.mxu0 0.0
  %178 = vmatpush1.msra.mxu0 0.0
  %179 = vmatprep.subr.mxu0 0.0
  %180 = vmatpush1.msra.mxu0 0.0
  %181 = vmatprep.subr.mxu0 0.0
  %182 = vmatpush1.msra.mxu0 0.0
  %183 = vmatprep.subr.mxu0 0.0
  %184 = vmatpush1.msra.mxu0 0.0
  %185 = vmatprep.subr.mxu0 0.0
  %186 = vmatpush1.msra.mxu0 0.0
  %187 = vmatprep.subr.mxu0 0.0
  %188 = vmatpush1.msra.mxu0 0.0
  %189 = vmatprep.subr.mxu0 0.0
  %190 = vmatpush1.msra.mxu0 0.0
  %191 = vmatprep.mubr.f32.mxu0 0.0
  %192 = vmatmul.mubr.f32.gmra.mrb[0].mxu0 %v122
  %v193 = vpop.f32.mrb[0].mxu0
  %v194 = vadd.f32 %v119, %v193
  %v195 = vpop.f32.mrb[0].mxu0
  %196 = vmatprep.mubr.f32.mxu0 0.0
  %197 = vmatmul.mubr.f32.gmra.mrb[0].mxu0 %v125
  %v198 = vpop.f32.mrb[0].mxu0
  %v199 = vadd.f32 %v119, %v198
  %v200 = vpop.f32.mrb[0].mxu0
  %201 = vdwg.mxu0
  %v202 = vsel %vm110, %v194, 0.0
  %203 = vadd.xlane.f32.xlu0 %v202
  %v204 = vpop.xlane.xlu0 %203
  %v205 = vsel %vm110, %v199, 0.0
  %206 = vadd.xlane.f32.xlu0 %v205
  %v207 = vpop.xlane.xlu0 %206
  %v208 = vrcp.pop 32.0
  %v209 = vmul.f32 %v204, %v208
  %v210 = vmul.f32 %v207, %v208
  %v211 = vsub.f32 %v194, %v209
  %v212 = vsub.f32 %v199, %v210
  %v213 = vmul.f32 %v211, %v211
  %v214 = vmul.f32 %v212, %v212
  %v215 = vsel %vm110, %v213, 0.0
  %216 = vadd.xlane.f32.xlu0 %v215
  %v217 = vpop.xlane.xlu0 %216
  %v218 = vsel %vm110, %v214, 0.0
  %219 = vadd.xlane.f32.xlu0 %v218
  %v220 = vpop.xlane.xlu0 %219
  %v221 = vmul.f32 %v217, %v208
  %v222 = vmul.f32 %v220, %v208
  %v223 = vadd.f32 %v221, 1e-05
  %v224 = vadd.f32 %v222, 1e-05
  %v225 = vrsqrt.pop %v223
  %v226 = vrsqrt.pop %v224
  %v227 = vmul.f32 %v211, %v225
  %v228 = vmul.f32 %v212, %v226
  %v229 = vlaneseq
  %v230 = vshrl.u32 %v229, 7
  %v231 = vsub.s32 1, %v230
  %v232 = vrot.slane %v55, %v231
  %v233 = vmul.f32 %v227, %v232
  %v234 = vmul.f32 %v228, %v232
  %v235 = vlaneseq
  %v236 = vshrl.u32 %v235, 7
  %v237 = vsub.s32 2, %v236
  %v238 = vrot.slane %v55, %v237
  %v239 = vadd.f32 %v233, %v238
  %v240 = vadd.f32 %v234, %v238
  %v241 = vmax.f32 %v239, 0.0
  %v242 = vmax.f32 %v240, 0.0
  %v243 = vld [vmem:[%s2] sm:$0xff]
  %v244 = vld [vmem:[%s2 + $0x8] sm:$0xff]
  %v245 = vld [vmem:[%s2 + $0x10] sm:$0xff]
  %v246 = vld [vmem:[%s2 + $0x18] sm:$0xff]
  %v247 = vld [vmem:[%s2 + $0x20] sm:$0xff]
  %v248 = vld [vmem:[%s2 + $0x28] sm:$0xff]
  %v249 = vld [vmem:[%s2 + $0x30] sm:$0xff]
  %v250 = vld [vmem:[%s2 + $0x38] sm:$0xff]
  %v251 = vld [vmem:[%s2 + $0x40] sm:$0xff]
  %v252 = vld [vmem:[%s2 + $0x48] sm:$0xff]
  %v253 = vld [vmem:[%s2 + $0x50] sm:$0xff]
  %v254 = vld [vmem:[%s2 + $0x58] sm:$0xff]
  %v257 = vrot.slane %v241, 7
  %v258 = vrot.slane %v242, 7
  %v259 = vsel %vm70, %v257, %v258
  %v262 = vsel %vm70, 0.0, %v257
  %v263 = vsel %vm79, %v262, 0.0
  %v264 = vsel %vm80, %v259, 0.0
  %v265 = vrot.slane %v241, 1
  %v266 = vrot.slane %v242, 1
  %v267 = vsel %vm83, %v265, %v266
  %v270 = vsel %vm83, %v266, 0.0
  %v271 = vsel %vm92, %v267, 0.0
  %v272 = vsel %vm93, %v270, 0.0
  %273 = vrot.lane.b32.xlu0 %v241, 32
  %v274 = vpop.permute.xlu0 %273
  %275 = vrot.lane.b32.xlu0 %v242, 32
  %v276 = vpop.permute.xlu0 %275
  %281 = vrot.lane.b32.xlu0 %v271, 64
  %v282 = vpop.permute.xlu0 %281
  %283 = vrot.lane.b32.xlu0 %v272, 64
  %v284 = vpop.permute.xlu0 %283
  %v287 = vsel %vm110, %v263, %v274
  %v288 = vsel %vm110, %v264, %v276
  %v289 = vsel %vm113, %v287, %v282
  %v290 = vsel %vm113, %v288, %v284
  %v291 = vlaneseq
  %v292 = vshrl.u32 %v291, 7
  %v293 = vsub.s32 3, %v292
  %v294 = vrot.slane %v55, %v293
  %v296 = vsel %vm120, %v289, 0
  %v299 = vsel %vm120, %v290, 0
  %301 = vmatprep.subr.mxu0 0.0
  %302 = vmatpush1.msra.mxu0 %v243
  %303 = vmatprep.subr.mxu0 0.0
  %304 = vmatpush1.msra.mxu0 %v244
  %305 = vmatprep.subr.mxu0 0.0
  %306 = vmatpush1.msra.mxu0 %v245
  %307 = vmatprep.subr.mxu0 0.0
  %308 = vmatpush1.msra.mxu0 %v246
  %309 = vmatprep.subr.mxu0 0.0
  %310 = vmatpush1.msra.mxu0 %v247
  %311 = vmatprep.subr.mxu0 0.0
  %312 = vmatpush1.msra.mxu0 %v248
  %313 = vmatprep.subr.mxu0 0.0
  %314 = vmatpush1.msra.mxu0 %v249
  %315 = vmatprep.subr.mxu0 0.0
  %316 = vmatpush1.msra.mxu0 %v250
  %317 = vmatprep.subr.mxu0 0.0
  %318 = vmatpush1.msra.mxu0 %v251
  %319 = vmatprep.subr.mxu0 0.0
  %320 = vmatpush1.msra.mxu0 %v252
  %321 = vmatprep.subr.mxu0 0.0
  %322 = vmatpush1.msra.mxu0 %v253
  %323 = vmatprep.subr.mxu0 0.0
  %324 = vmatpush1.msra.mxu0 %v254
  %325 = vmatprep.subr.mxu0 0.0
  %326 = vmatpush1.msra.mxu0 0.0
  %327 = vmatprep.subr.mxu0 0.0
  %328 = vmatpush1.msra.mxu0 0.0
  %329 = vmatprep.subr.mxu0 0.0
  %330 = vmatpush1.msra.mxu0 0.0
  %331 = vmatprep.subr.mxu0 0.0
  %332 = vmatpush1.msra.mxu0 0.0
  %333 = vmatprep.subr.mxu0 0.0
  %334 = vmatpush1.msra.mxu0 0.0
  %335 = vmatprep.subr.mxu0 0.0
  %336 = vmatpush1.msra.mxu0 0.0
  %337 = vmatprep.subr.mxu0 0.0
  %338 = vmatpush1.msra.mxu0 0.0
  %339 = vmatprep.subr.mxu0 0.0
  %340 = vmatpush1.msra.mxu0 0.0
  %341 = vmatprep.subr.mxu0 0.0
  %342 = vmatpush1.msra.mxu0 0.0
  %343 = vmatprep.subr.mxu0 0.0
  %344 = vmatpush1.msra.mxu0 0.0
  %345 = vmatprep.subr.mxu0 0.0
  %346 = vmatpush1.msra.mxu0 0.0
  %347 = vmatprep.subr.mxu0 0.0
  %348 = vmatpush1.msra.mxu0 0.0
  %349 = vmatprep.subr.mxu0 0.0
  %350 = vmatpush1.msra.mxu0 0.0
  %351 = vmatprep.subr.mxu0 0.0
  %352 = vmatpush1.msra.mxu0 0.0
  %353 = vmatprep.subr.mxu0 0.0
  %354 = vmatpush1.msra.mxu0 0.0
  %355 = vmatprep.subr.mxu0 0.0
  %356 = vmatpush1.msra.mxu0 0.0
  %357 = vmatprep.subr.mxu0 0.0
  %358 = vmatpush1.msra.mxu0 0.0
  %359 = vmatprep.subr.mxu0 0.0
  %360 = vmatpush1.msra.mxu0 0.0
  %361 = vmatprep.subr.mxu0 0.0
  %362 = vmatpush1.msra.mxu0 0.0
  %363 = vmatprep.subr.mxu0 0.0
  %364 = vmatpush1.msra.mxu0 0.0
  %365 = vmatprep.mubr.f32.mxu0 0.0
  %366 = vmatmul.mubr.f32.gmra.mrb[0].mxu0 %v296
  %v367 = vpop.f32.mrb[0].mxu0
  %v368 = vadd.f32 %v294, %v367
  %v369 = vpop.f32.mrb[0].mxu0
  %370 = vmatprep.mubr.f32.mxu0 0.0
  %371 = vmatmul.mubr.f32.gmra.mrb[0].mxu0 %v299
  %v372 = vpop.f32.mrb[0].mxu0
  %v373 = vadd.f32 %v294, %v372
  %v374 = vpop.f32.mrb[0].mxu0
  %375 = vdwg.mxu0
  %v376 = vsel %vm110, %v368, 0.0
  %377 = vadd.xlane.f32.xlu0 %v376
  %v378 = vpop.xlane.xlu0 %377
  %v379 = vsel %vm110, %v373, 0.0
  %380 = vadd.xlane.f32.xlu0 %v379
  %v381 = vpop.xlane.xlu0 %380
  %v382 = vmul.f32 %v378, %v208
  %v383 = vmul.f32 %v381, %v208
  %v384 = vsub.f32 %v368, %v382
  %v385 = vsub.f32 %v373, %v383
  %v386 = vmul.f32 %v384, %v384
  %v387 = vmul.f32 %v385, %v385
  %v388 = vsel %vm110, %v386, 0.0
  %389 = vadd.xlane.f32.xlu0 %v388
  %v390 = vpop.xlane.xlu0 %389
  %v391 = vsel %vm110, %v387, 0.0
  %392 = vadd.xlane.f32.xlu0 %v391
  %v393 = vpop.xlane.xlu0 %392
  %v394 = vmul.f32 %v390, %v208
  %v395 = vmul.f32 %v393, %v208
  %v396 = vadd.f32 %v394, 1e-05
  %v397 = vadd.f32 %v395, 1e-05
  %v398 = vrsqrt.pop %v396
  %v399 = vrsqrt.pop %v397
  %v400 = vmul.f32 %v384, %v398
  %v401 = vmul.f32 %v385, %v399
  %v402 = vlaneseq
  %v403 = vshrl.u32 %v402, 7
  %v404 = vsub.s32 4, %v403
  %v405 = vrot.slane %v55, %v404
  %v406 = vmul.f32 %v400, %v405
  %v407 = vmul.f32 %v401, %v405
  %v408 = vlaneseq
  %v409 = vshrl.u32 %v408, 7
  %v410 = vsub.s32 5, %v409
  %v411 = vrot.slane %v55, %v410
  %v412 = vadd.f32 %v406, %v411
  %v413 = vadd.f32 %v407, %v411
  %v414 = vmax.f32 %v412, 0.0
  %v415 = vmax.f32 %v413, 0.0
  %v416 = vlaneseq
  %v417 = vshrl.u32 %v416, 7
  %v418 = vsub.s32 6, %v417
  %v419 = vrot.slane %v55, %v418
  %v420 = vmul.f32 %v414, %v419
  %v421 = vmul.f32 %v415, %v419
  %v422 = vsel %vm110, %v420, 0.0
  %423 = vadd.xlane.f32.xlu0 %v422
  %v424 = vpop.xlane.xlu0 %423
  %v425 = vsel %vm110, %v421, 0.0
  %426 = vadd.xlane.f32.xlu0 %v425
  %v427 = vpop.xlane.xlu0 %426
  %v428 = vld [vmem:[#allocation2] sm:$0x1]
  %v430 = vlaneseq
  %v431 = vshrl.u32 %v430, 7
  %v432 = vsub.s32 0, %v431
  %v433 = vrot.slane %v428, %v432
  %v435 = vadd.f32 %v424, %v433
  %v436 = vadd.f32 %v427, %v433
  %v437 = vmax.f32 %v435, 0.0
  %v438 = vmax.f32 %v436, 0.0
  %vm439 = vcmask 7168
  %440 = vst.msk [vmem:[%s5] sm:$0xff] %vm439, %v437
  %441 = vst.msk [vmem:[%s5 + $0x8] sm:$0xff] %vm439, %v438
  // Predicated region
  $region22: #{tpu_custom_call.1} parent=0 // pred_check
    _
  $region23: #{tpu_custom_call.1} parent=0 // pred_check_branch
    %443 = sbr.rel (0) target = $region25
  $region24: #{tpu_custom_call.1} parent=0 // pred_region
    _
  $region25: #{tpu_custom_call.1} parent=0 // pred_fallthru
    _
  // Predicated region
  $region26: #{tpu_custom_call.1} parent=0 // pred_check
    _
  $region27: #{tpu_custom_call.1} parent=0 // pred_check_branch
    %445 = sbr.rel (0) target = $region29
  $region28: #{tpu_custom_call.1} parent=0 // pred_region
    _
  $region29: #{tpu_custom_call.1} parent=0 // pred_fallthru
    _

</llo_original>
